<compile_context>
chip_gen: v5e
topology: v5e:2x2
jax: 0.10.0
libtpu: 0.0.40
codegen_flags: <defaults>
</compile_context>

<pallas_src>
import math
import functools

import jax
import jax.numpy as jnp
from jax import lax
from jax.experimental import pallas as pl
from jax.experimental.pallas import tpu as pltpu


def _round_up(x, m):
    return (x + m - 1) // m * m


def _flash_step(q_ref, k_ref, v_ref, mask_ref, o_ref, m_sc, l_sc, acc_sc,
                *, scale, n_actual, tn, n_ragged, mxu_dtype):
    kv = pl.program_id(1)

    @pl.when(kv == 0)
    def _():
        m_sc[...] = jnp.full_like(m_sc, -jnp.inf)
        l_sc[...] = jnp.zeros_like(l_sc)
        acc_sc[...] = jnp.zeros_like(acc_sc)

    # Fold 1/sqrt(hidden_dim) into Q (tm*D multiplies, not tm*tn) and present
    # bf16 operands to the MXU (f32 matmuls run multi-pass on the MXU).
    q = (q_ref[...].astype(jnp.float32) * scale).astype(mxu_dtype)
    k = k_ref[...].astype(mxu_dtype)

    # Q @ K^T without an explicit transpose: contract the last dims directly.
    s = lax.dot_general(q, k, (((1,), (1,)), ((), ())),
                        preferred_element_type=jnp.float32)

    # PyTorch semantics: masked_fill(Attn, mask, 1e-8) applied BEFORE softmax
    # (masked keys still receive ~uniform weight -- matches the reference).
    if mask_ref is not None:
        s = jnp.where(mask_ref[...] != 0, jnp.float32(1e-8), s)

    # Ragged last kv tile: out-of-bounds K rows hold garbage; force their
    # scores to -1e30 so exp() is exactly 0.  Only emitted when N % tn != 0.
    if n_ragged:
        col = kv * tn + lax.broadcasted_iota(jnp.int32, s.shape, 1)
        s = jnp.where(col < n_actual, s, jnp.float32(-1e30))

    # Online (flash) softmax update, f32 running statistics.
    m_prev = m_sc[...]
    m_new = jnp.maximum(m_prev, jnp.max(s, axis=-1, keepdims=True))
    alpha = jnp.exp(m_prev - m_new)
    p = jnp.exp(s - m_new)
    l_sc[...] = alpha * l_sc[...] + jnp.sum(p, axis=-1, keepdims=True)

    v = v_ref[...]
    if n_ragged:
        # Garbage V rows in the ragged tile may be Inf/NaN; p is exactly 0
        # there but 0*NaN = NaN, so zero-fill the out-of-bounds V rows.
        row = kv * tn + lax.broadcasted_iota(jnp.int32, v.shape, 0)
        v = jnp.where(row < n_actual, v, jnp.zeros_like(v))

    pv = lax.dot_general(p.astype(mxu_dtype), v.astype(mxu_dtype),
                         (((1,), (0,)), ((), ())),
                         preferred_element_type=jnp.float32)
    acc_sc[...] = alpha * acc_sc[...] + pv
    m_sc[...] = m_new

    @pl.when(kv == pl.num_programs(1) - 1)
    def _():
        inv_l = pl.reciprocal(l_sc[...], approx=True)   # EUP slot, ~free
        o_ref[...] = (acc_sc[...] * inv_l).astype(o_ref.dtype)


def _kernel_nomask(q_ref, k_ref, v_ref, o_ref, m_sc, l_sc, acc_sc, **kw):
    _flash_step(q_ref, k_ref, v_ref, None, o_ref, m_sc, l_sc, acc_sc, **kw)


def _kernel_masked(q_ref, k_ref, v_ref, mask_ref, o_ref, m_sc, l_sc, acc_sc,
                   **kw):
    _flash_step(q_ref, k_ref, v_ref, mask_ref, o_ref, m_sc, l_sc, acc_sc, **kw)


def attentive_pooling(Q, K, V, hidden_dim, mask=None, *,
                      tm_max=256, tn_max=1024):
    """Pallas implementation of AttentivePooling.forward."""
    M, D = Q.shape
    N, Dk = K.shape
    Nv, Dv = V.shape
    assert D == Dk and N == Nv
    scale = 1.0 / math.sqrt(hidden_dim)

    in_dtype = Q.dtype
    # bf16 MXU operands when inputs are f32; accumulation stays f32.
    mxu_dtype = jnp.bfloat16 if in_dtype == jnp.float32 else in_dtype
    itemsize = jnp.dtype(in_dtype).itemsize

    # ---- tile selection ---------------------------------------------------
    # M tile: multiple of 8 (or the full M).  For M >= 16 aim for >= 2 M-tiles
    # so both v7x TensorCores get work (the M axis is the "parallel" one).
    if M <= 16:
        tm = M
    else:
        tm = min(tm_max, _round_up(-(-M // 2), 8))

    # N tile: multiple of 128, as large as a ~16 MiB double-buffered K+V
    # budget allows (amortizes the ~0.35us per-grid-step overhead); use the
    # full (possibly non-128-multiple) N when it fits in one tile.
    tn = max(128, tn_max - tn_max % 128)
    while tn > 128 and 2 * 2 * tn * (D + Dv) * itemsize > 16 * 1024 * 1024:
        tn //= 2
    if N <= tn:
        tn = N

    grid = (pl.cdiv(M, tm), pl.cdiv(N, tn))
    n_ragged = (N % tn) != 0

    kw = dict(scale=scale, n_actual=N, tn=tn, n_ragged=n_ragged,
              mxu_dtype=mxu_dtype)

    # Feature dims D/Dv are NOT padded to 128: block last dims equal the full
    # array dims (legal), so there is no wrapper-side jnp.pad HBM pass and no
    # DMA inflation for small hidden dims.
    in_specs = [
        pl.BlockSpec((tm, D), lambda i, j: (i, 0)),    # Q tile (resident over j)
        pl.BlockSpec((tn, D), lambda i, j: (j, 0)),    # K tile
        pl.BlockSpec((tn, Dv), lambda i, j: (j, 0)),   # V tile
    ]
    args = [Q, K, V]

    if mask is None:
        kernel = functools.partial(_kernel_nomask, **kw)
    else:
        mask_i8 = mask if mask.dtype == jnp.int8 else mask.astype(jnp.int8)
        in_specs.append(pl.BlockSpec((tm, tn), lambda i, j: (i, j)))
        args.append(mask_i8)
        kernel = functools.partial(_kernel_masked, **kw)

    out = pl.pallas_call(
        kernel,
        out_shape=jax.ShapeDtypeStruct((M, Dv), in_dtype),
        grid_spec=pltpu.PrefetchScalarGridSpec(
            num_scalar_prefetch=0,
            grid=grid,
            in_specs=in_specs,
            out_specs=pl.BlockSpec((tm, Dv), lambda i, j: (i, 0)),
            scratch_shapes=[
                pltpu.VMEM((tm, 1), jnp.float32),     # running max m
                pltpu.VMEM((tm, 1), jnp.float32),     # running denom l
                pltpu.VMEM((tm, Dv), jnp.float32),    # f32 accumulator
            ],
        ),
        compiler_params=pltpu.CompilerParams(
            dimension_semantics=("parallel", "arbitrary"),
            # <= ~48 MiB: safe on v7x (64 MiB physical) while lifting the
            # 16/32 MiB scoped defaults on v5e/v6e for the larger tn tiles.
            vmem_limit_bytes=48 * 1024 * 1024,
        ),
    )(*args)

    return out


def _reference(Q, K, V, hidden_dim, mask=None):
    s = (Q @ K.T) / math.sqrt(hidden_dim)
    if mask is not None:
        s = jnp.where(mask, jnp.float32(1e-8), s)
    p = jax.nn.softmax(s, axis=-1)
    return p @ V


if __name__ == "__main__":
    # AttentivePooling has no learned parameters; hidden_dim is the only config.
    hidden_dim = 32
    M, N, D, Dv = 8, 8, hidden_dim, 32

    key = jax.random.PRNGKey(0)
    kq, kk, kv, km = jax.random.split(key, 4)
    Q = jax.random.normal(kq, (M, D), dtype=jnp.float32)
    K = jax.random.normal(kk, (N, D), dtype=jnp.float32)
    V = jax.random.normal(kv, (N, Dv), dtype=jnp.float32)
    mask = jax.random.bernoulli(km, p=0.25, shape=(M, N))

    # bf16 MXU operands + approx reciprocal -> compare at bf16-level tolerance.
    TOL = dict(atol=5e-2, rtol=5e-2)

    # No-mask path
    out = jax.block_until_ready(attentive_pooling(Q, K, V, hidden_dim))
    ref = _reference(Q, K, V, hidden_dim)
    assert jnp.allclose(out, ref, **TOL), "no-mask mismatch"

    # Masked path
    out_m = jax.block_until_ready(
        attentive_pooling(Q, K, V, hidden_dim, mask=mask))
    ref_m = _reference(Q, K, V, hidden_dim, mask=mask)
    assert jnp.allclose(out_m, ref_m, **TOL), "masked mismatch"

    # Exercise multi-tile online softmax with ragged M and N tiles
    # (M=40 -> 2 M-tiles, N=300 with tn=128 -> 3 kv-tiles, last one ragged).
    M2, N2, D2, Dv2 = 40, 300, 32, 8
    k2 = jax.random.split(key, 4)
    Q2 = jax.random.normal(k2[0], (M2, D2), dtype=jnp.float32)
    K2 = jax.random.normal(k2[1], (N2, D2), dtype=jnp.float32)
    V2 = jax.random.normal(k2[2], (N2, Dv2), dtype=jnp.float32)
    mask2 = jax.random.bernoulli(k2[3], p=0.3, shape=(M2, N2))
    out2 = jax.block_until_ready(
        attentive_pooling(Q2, K2, V2, hidden_dim, mask=mask2, tn_max=128))
    ref2 = _reference(Q2, K2, V2, hidden_dim, mask=mask2)
    assert jnp.allclose(out2, ref2, **TOL), "tiled/ragged mismatch"

    # Also ragged tiles without a mask (hits the garbage-V zero-fill path).
    out3 = jax.block_until_ready(
        attentive_pooling(Q2, K2, V2, hidden_dim, tn_max=128))
    ref3 = _reference(Q2, K2, V2, hidden_dim)
    assert jnp.allclose(out3, ref3, **TOL), "ragged no-mask mismatch"

    print("KERNEL_OK")
</pallas_src>

<mosaic_0001>
module attributes {stable_mosaic.version = 11 : i64} {
  func.func @_kernel_nomask(%arg0: i32, %arg1: i32, %arg2: memref<8x32xf32, #tpu.memory_space<vmem>>, %arg3: memref<8x32xf32, #tpu.memory_space<vmem>>, %arg4: memref<8x32xf32, #tpu.memory_space<vmem>>, %arg5: memref<8x32xf32, #tpu.memory_space<vmem>>, %arg6: memref<8x1xf32, #tpu.memory_space<vmem>>, %arg7: memref<8x1xf32, #tpu.memory_space<vmem>>, %arg8: memref<8x32xf32, #tpu.memory_space<vmem>>) attributes {dimension_semantics = [#tpu.dimension_semantics<parallel>, #tpu.dimension_semantics<arbitrary>], iteration_bounds = array<i64: 1, 1>, scalar_prefetch = 0 : i64, scratch_operands = 3 : i64, tpu.core_type = #tpu.core_type<tc>, window_params = [{transform_indices = @transform_0, window_bounds = array<i64: 8, 32>}, {transform_indices = @transform_1, window_bounds = array<i64: 8, 32>}, {transform_indices = @transform_2, window_bounds = array<i64: 8, 32>}, {transform_indices = @transform_3, window_bounds = array<i64: 8, 32>}]} {
    %c0_i32 = arith.constant 0 : i32
    %0 = arith.cmpi eq, %arg1, %c0_i32 : i32
    %1 = arith.extui %0 : i1 to i32
    %c0_i32_0 = arith.constant 0 : i32
    %2 = arith.cmpi ne, %1, %c0_i32_0 : i32
    scf.if %2 {
      %cst_24 = arith.constant 0xFF800000 : f32
      %38 = vector.broadcast %cst_24 : f32 to vector<8x1xf32>
      %c0_25 = arith.constant 0 : index
      %c0_26 = arith.constant 0 : index
      %39 = vector.load %arg6[%c0_25, %c0_26] : memref<8x1xf32, #tpu.memory_space<vmem>>, vector<8x1xf32>
      tpu.vector_store %arg6[%c0_25, %c0_26], %38 {strides = array<i32>} : memref<8x1xf32, #tpu.memory_space<vmem>>, vector<8x1xf32>,
      %cst_27 = arith.constant 0.000000e+00 : f32
      %40 = vector.broadcast %cst_27 : f32 to vector<8x1xf32>
      %c0_28 = arith.constant 0 : index
      %c0_29 = arith.constant 0 : index
      %41 = vector.load %arg7[%c0_28, %c0_29] : memref<8x1xf32, #tpu.memory_space<vmem>>, vector<8x1xf32>
      tpu.vector_store %arg7[%c0_28, %c0_29], %40 {strides = array<i32>} : memref<8x1xf32, #tpu.memory_space<vmem>>, vector<8x1xf32>,
      %cst_30 = arith.constant 0.000000e+00 : f32
      %42 = vector.broadcast %cst_30 : f32 to vector<8x32xf32>
      %c0_31 = arith.constant 0 : index
      %c0_32 = arith.constant 0 : index
      %43 = vector.load %arg8[%c0_31, %c0_32] : memref<8x32xf32, #tpu.memory_space<vmem>>, vector<8x32xf32>
      tpu.vector_store %arg8[%c0_31, %c0_32], %42 {strides = array<i32>} : memref<8x32xf32, #tpu.memory_space<vmem>>, vector<8x32xf32>,
    } else {
    }
    %c0 = arith.constant 0 : index
    %c0_1 = arith.constant 0 : index
    %3 = vector.load %arg2[%c0, %c0_1] : memref<8x32xf32, #tpu.memory_space<vmem>>, vector<8x32xf32>
    %cst = arith.constant 0.176776692 : f32
    %4 = vector.broadcast %cst : f32 to vector<8x32xf32>
    %5 = arith.mulf %3, %4 : vector<8x32xf32>
    %6 = arith.truncf %5 : vector<8x32xf32> to vector<8x32xbf16>
    %c0_2 = arith.constant 0 : index
    %c0_3 = arith.constant 0 : index
    %7 = vector.load %arg3[%c0_2, %c0_3] : memref<8x32xf32, #tpu.memory_space<vmem>>, vector<8x32xf32>
    %8 = arith.truncf %7 : vector<8x32xf32> to vector<8x32xbf16>
    %cst_4 = arith.constant dense<0.000000e+00> : vector<8x8xf32>
    %9 = tpu.matmul %6, %8, %cst_4 {dimension_numbers = #tpu.dot_dimension_numbers<[1], [1], [0], [0], [0, 0, 1, 0], [], []>} : vector<8x32xbf16>, vector<8x32xbf16>, vector<8x8xf32> -> vector<8x8xf32>
    %c0_5 = arith.constant 0 : index
    %c0_6 = arith.constant 0 : index
    %10 = vector.load %arg6[%c0_5, %c0_6] : memref<8x1xf32, #tpu.memory_space<vmem>>, vector<8x1xf32>
    %cst_7 = arith.constant dense<0xFF800000> : vector<8xf32>
    %11 = vector.multi_reduction <maximumf>, %9, %cst_7 [1] : vector<8x8xf32> to vector<8xf32>
    %12 = vector.shape_cast %11 : vector<8xf32> to vector<8x1xf32>
    %13 = arith.maximumf %10, %12 : vector<8x1xf32>
    %14 = arith.subf %10, %13 : vector<8x1xf32>
    %15 = math.exp %14 : vector<8x1xf32>
    %16 = vector.broadcast %13 : vector<8x1xf32> to vector<8x8xf32>
    %17 = arith.subf %9, %16 : vector<8x8xf32>
    %18 = math.exp %17 : vector<8x8xf32>
    %c0_8 = arith.constant 0 : index
    %c0_9 = arith.constant 0 : index
    %19 = vector.load %arg7[%c0_8, %c0_9] : memref<8x1xf32, #tpu.memory_space<vmem>>, vector<8x1xf32>
    %20 = arith.mulf %15, %19 : vector<8x1xf32>
    %cst_10 = arith.constant dense<0.000000e+00> : vector<8xf32>
    %21 = vector.multi_reduction <add>, %18, %cst_10 [1] : vector<8x8xf32> to vector<8xf32>
    %22 = vector.shape_cast %21 : vector<8xf32> to vector<8x1xf32>
    %23 = arith.addf %20, %22 : vector<8x1xf32>
    %c0_11 = arith.constant 0 : index
    %c0_12 = arith.constant 0 : index
    %24 = vector.load %arg7[%c0_11, %c0_12] : memref<8x1xf32, #tpu.memory_space<vmem>>, vector<8x1xf32>
    tpu.vector_store %arg7[%c0_11, %c0_12], %23 {strides = array<i32>} : memref<8x1xf32, #tpu.memory_space<vmem>>, vector<8x1xf32>,
    %c0_13 = arith.constant 0 : index
    %c0_14 = arith.constant 0 : index
    %25 = vector.load %arg4[%c0_13, %c0_14] : memref<8x32xf32, #tpu.memory_space<vmem>>, vector<8x32xf32>
    %26 = arith.truncf %18 : vector<8x8xf32> to vector<8x8xbf16>
    %27 = arith.truncf %25 : vector<8x32xf32> to vector<8x32xbf16>
    %cst_15 = arith.constant dense<0.000000e+00> : vector<8x32xf32>
    %28 = tpu.matmul %26, %27, %cst_15 {dimension_numbers = #tpu.dot_dimension_numbers<[1], [0], [0], [1], [0, 0, 1, 1], [], []>} : vector<8x8xbf16>, vector<8x32xbf16>, vector<8x32xf32> -> vector<8x32xf32>
    %c0_16 = arith.constant 0 : index
    %c0_17 = arith.constant 0 : index
    %29 = vector.load %arg8[%c0_16, %c0_17] : memref<8x32xf32, #tpu.memory_space<vmem>>, vector<8x32xf32>
    %30 = vector.broadcast %15 : vector<8x1xf32> to vector<8x32xf32>
    %31 = arith.mulf %30, %29 : vector<8x32xf32>
    %32 = arith.addf %31, %28 : vector<8x32xf32>
    %c0_18 = arith.constant 0 : index
    %c0_19 = arith.constant 0 : index
    %33 = vector.load %arg8[%c0_18, %c0_19] : memref<8x32xf32, #tpu.memory_space<vmem>>, vector<8x32xf32>
    tpu.vector_store %arg8[%c0_18, %c0_19], %32 {strides = array<i32>} : memref<8x32xf32, #tpu.memory_space<vmem>>, vector<8x32xf32>,
    %c0_20 = arith.constant 0 : index
    %c0_21 = arith.constant 0 : index
    %34 = vector.load %arg6[%c0_20, %c0_21] : memref<8x1xf32, #tpu.memory_space<vmem>>, vector<8x1xf32>
    tpu.vector_store %arg6[%c0_20, %c0_21], %13 {strides = array<i32>} : memref<8x1xf32, #tpu.memory_space<vmem>>, vector<8x1xf32>,
    %c0_i32_22 = arith.constant 0 : i32
    %35 = arith.cmpi eq, %arg1, %c0_i32_22 : i32
    %36 = arith.extui %35 : i1 to i32
    %c0_i32_23 = arith.constant 0 : i32
    %37 = arith.cmpi ne, %36, %c0_i32_23 : i32
    scf.if %37 {
      %c0_24 = arith.constant 0 : index
      %c0_25 = arith.constant 0 : index
      %38 = vector.load %arg7[%c0_24, %c0_25] : memref<8x1xf32, #tpu.memory_space<vmem>>, vector<8x1xf32>
      %39 = tpu.reciprocal %38 {approx = true} : vector<8x1xf32> -> vector<8x1xf32>
      %c0_26 = arith.constant 0 : index
      %c0_27 = arith.constant 0 : index
      %40 = vector.load %arg8[%c0_26, %c0_27] : memref<8x32xf32, #tpu.memory_space<vmem>>, vector<8x32xf32>
      %41 = vector.broadcast %39 : vector<8x1xf32> to vector<8x32xf32>
      %42 = arith.mulf %40, %41 : vector<8x32xf32>
      %c0_28 = arith.constant 0 : index
      %c0_29 = arith.constant 0 : index
      %43 = vector.load %arg5[%c0_28, %c0_29] : memref<8x32xf32, #tpu.memory_space<vmem>>, vector<8x32xf32>
      tpu.vector_store %arg5[%c0_28, %c0_29], %42 {strides = array<i32>} : memref<8x32xf32, #tpu.memory_space<vmem>>, vector<8x32xf32>,
    } else {
    }
    return
  }
  func.func @transform_0(%arg0: i32, %arg1: i32) -> (i32, i32) {
    %c0_i32 = arith.constant 0 : i32
    %c0_i32_0 = arith.constant 0 : i32
    return %arg0, %c0_i32 : i32, i32
  }
  func.func @transform_1(%arg0: i32, %arg1: i32) -> (i32, i32) {
    %c0_i32 = arith.constant 0 : i32
    %c0_i32_0 = arith.constant 0 : i32
    return %arg1, %c0_i32 : i32, i32
  }
  func.func @transform_2(%arg0: i32, %arg1: i32) -> (i32, i32) {
    %c0_i32 = arith.constant 0 : i32
    %c0_i32_0 = arith.constant 0 : i32
    return %arg1, %c0_i32 : i32, i32
  }
  func.func @transform_3(%arg0: i32, %arg1: i32) -> (i32, i32) {
    %c0_i32 = arith.constant 0 : i32
    %c0_i32_0 = arith.constant 0 : i32
    return %arg0, %c0_i32 : i32, i32
  }
}

</mosaic_0001>

<llo_original>
// kernel: tpu_custom_call.1
$region0: #{tpu_custom_call.1}
  #allocation0 [shape = 'u32[]', space=smem, size = 0x4, offset = 0x4, fixed_abs, tag = 'smem constant byte address 0x4 - core index']
  #allocation1 [shape = 'u32[72,128]{1,0:T(1,128)}', space=vmem, size = 0x9000, scoped, tag = 'internal scratch']
  #allocation2 [shape = 'f32[8,1]{1,0:T(8,128)}', space=vmem, size = 0x1000, scoped, tag = 'scratch operand']
  #allocation3 [shape = 'f32[8,1]{1,0:T(8,128)}', space=vmem, size = 0x1000, scoped, tag = 'scratch operand']
  #allocation4 [shape = 'f32[8,32]{1,0:T(8,128)}', space=vmem, size = 0x1000, scoped, tag = 'scratch operand']
  %s0 = inlined_call_operand.hbm [shape: f32[8,32], index: 0, kind: input, shape index: {}]
  %s1 = inlined_call_operand.hbm [shape: f32[8,32], index: 1, kind: input, shape index: {}]
  %s2 = inlined_call_operand.hbm [shape: f32[8,32], index: 2, kind: input, shape index: {}]
  %s3 = inlined_call_operand.hbm [shape: f32[8,32], index: 3, kind: output, shape index: {}]
  %s4 = sld [smem:[#allocation0]]
  $region42: #{tpu_custom_call.1} parent=0
    _
  %s6 = ssub.s32 1, %s4
  %s7 = scalar_select 0, %s6, %s4
  $region1: #{tpu_custom_call.1} parent=0
    #allocation5 [shape = 'u8[4096]{0}', space=vmem, size = 0x1000, scoped, tag = 'input window, operand 0, single buffered']
    #allocation6 [shape = 's32[1]{0}', space=sflag, size = 0x4, scoped, tag = 'scoped memory for tpu_custom_call.1']
    #allocation7 [shape = 's32[1]{0}', space=sflag, size = 0x4, scoped, tag = 'scoped memory for tpu_custom_call.1']
    #allocation8 [shape = 'u8[4096]{0}', space=vmem, size = 0x1000, scoped, tag = 'input window, operand 1, single buffered']
    #allocation9 [shape = 's32[1]{0}', space=sflag, size = 0x4, scoped, tag = 'scoped memory for tpu_custom_call.1']
    #allocation10 [shape = 'u8[4096]{0}', space=vmem, size = 0x1000, scoped, tag = 'input window, operand 2, single buffered']
    #allocation11 [shape = 'u8[4096]{0}', space=vmem, size = 0x1000, scoped, tag = 'output window, operand 0, single buffered']
    %8 = vsyncpa [#allocation6], 0
    %9 = vsyncpa [#allocation9], 0
    %10 = vsyncpa [#allocation7], 0
    // Predicated region
    $region2: #{tpu_custom_call.1} parent=1 // pred_check
      _
    $region3: #{tpu_custom_call.1} parent=1 // pred_check_branch
      %12 = sbr.rel (0) target = $region5
    $region4: #{tpu_custom_call.1} parent=1 // pred_region
      %14 = vsyncadd [#allocation6], 0
      %s16 = sshll.u32 %s0, 4
      %s17 = int_to_ptr.hbm [resolvable:$true] %s16
      %s18 = sshll.u32 [#allocation5], 4
      %s19 = int_to_ptr.vmem [resolvable:$true] %s18
      %21 = dma.hbm_to_vmem [thread:$0]  %s17, 128, %s19, [#allocation6]
    $region5: #{tpu_custom_call.1} parent=1 // pred_fallthru
      _
    // Predicated region
    $region6: #{tpu_custom_call.1} parent=1 // pred_check
      _
    $region7: #{tpu_custom_call.1} parent=1 // pred_check_branch
      %23 = sbr.rel (0) target = $region9
    $region8: #{tpu_custom_call.1} parent=1 // pred_region
      %25 = vsyncadd [#allocation9], 0
      %s27 = sshll.u32 %s1, 4
      %s28 = int_to_ptr.hbm [resolvable:$true] %s27
      %s29 = sshll.u32 [#allocation8], 4
      %s30 = int_to_ptr.vmem [resolvable:$true] %s29
      %32 = dma.hbm_to_vmem [thread:$0]  %s28, 128, %s30, [#allocation9]
    $region9: #{tpu_custom_call.1} parent=1 // pred_fallthru
      _
    // Predicated region
    $region10: #{tpu_custom_call.1} parent=1 // pred_check
      _
    $region11: #{tpu_custom_call.1} parent=1 // pred_check_branch
      %34 = sbr.rel (0) target = $region13
    $region12: #{tpu_custom_call.1} parent=1 // pred_region
      %36 = vsyncadd [#allocation9], 0
      %s38 = sshll.u32 %s2, 4
      %s39 = int_to_ptr.hbm [resolvable:$true] %s38
      %s40 = sshll.u32 [#allocation10], 4
      %s41 = int_to_ptr.vmem [resolvable:$true] %s40
      %43 = dma.hbm_to_vmem [thread:$0]  %s39, 128, %s41, [#allocation9]
    $region13: #{tpu_custom_call.1} parent=1 // pred_fallthru
      _
    // Predicated region
    $region14: #{tpu_custom_call.1} parent=1 // pred_check
      _
    $region15: #{tpu_custom_call.1} parent=1 // pred_check_branch
      %45 = sbr.rel (0) target = $region17
    $region16: #{tpu_custom_call.1} parent=1 // pred_region
      %47 = dma.done [#allocation6], 128
    $region17: #{tpu_custom_call.1} parent=1 // pred_fallthru
      _
    // Predicated region
    $region18: #{tpu_custom_call.1} parent=1 // pred_check
      _
    $region19: #{tpu_custom_call.1} parent=1 // pred_check_branch
      %49 = sbr.rel (0) target = $region21
    $region20: #{tpu_custom_call.1} parent=1 // pred_region
      %51 = dma.done [#allocation9], 128
    $region21: #{tpu_custom_call.1} parent=1 // pred_fallthru
      _
    // Predicated region
    $region22: #{tpu_custom_call.1} parent=1 // pred_check
      _
    $region23: #{tpu_custom_call.1} parent=1 // pred_check_branch
      %53 = sbr.rel (0) target = $region25
    $region24: #{tpu_custom_call.1} parent=1 // pred_region
      %55 = dma.done [#allocation9], 128
    $region25: #{tpu_custom_call.1} parent=1 // pred_fallthru
      _
    %p57 = scmp.eq.s32.totalorder 0, 0
    // Predicated region
    $region26: #{tpu_custom_call.1} parent=1 // pred_check
      %p58 = pneg %p57
    $region27: #{tpu_custom_call.1} parent=1 // pred_check_branch
      %60 = sbr.rel (%p58) target = $region29
    $region28: #{tpu_custom_call.1} parent=1 // pred_region
      %vm61 = vcmask 7168
      %62 = vst.msk [vmem:[#allocation2] sm:$0xff] %vm61, -inf
      %63 = vst.msk [vmem:[#allocation3] sm:$0xff] %vm61, 0.0
      %vm64 = vcmask 261120
      %65 = vst.msk [vmem:[#allocation4] sm:$0xff] %vm64, 0.0
    $region29: #{tpu_custom_call.1} parent=1 // pred_fallthru
      _
    %v66 = vld [vmem:[#allocation5] sm:$0xff]
    %v67 = vmul.f32 %v66, 0.17677669
    %v68 = vpack.c.bf16 %v67, %v67
    %v69 = vld [vmem:[#allocation8] sm:$0xff]
    %v70 = vpack.c.bf16 %v69, %v69
    %vm71 = vcmask 261120
    %v73 = vsel %vm71, %v68, 0
    %v76 = vsel %vm71, %v70, 0
    %78 = vmatpush.bf16.xpose.msra.mxu0 0
    %79 = vmatpush.bf16.xpose.msra.mxu0 0
    %80 = vmatpush.bf16.xpose.msra.mxu0 0
    %81 = vmatpush.bf16.xpose.msra.mxu0 0
    %82 = vmatpush.bf16.xpose.msra.mxu0 0
    %83 = vmatpush.bf16.xpose.msra.mxu0 0
    %84 = vmatpush.bf16.xpose.msra.mxu0 0
    %85 = vmatpush.bf16.xpose.msra.mxu0 %v76
    %86 = vmatmul.bf16.gmra.mxu0 %v73
    %v87 = vpop.f32.mrf.mxu0
    %v88 = vadd.f32 0.0, %v87
    %v89 = vpop.f32.mrf.mxu0
    %90 = vdwg.mxu0
    %v91 = vld [vmem:[#allocation2] sm:$0xff]
    %vm92 = vcmask 64512
    %v93 = vsel %vm92, %v88, -inf
    %94 = vmax.xlane.f32.xlu0 %v93
    %v95 = vpop.xlane.xlu0 %94
    %v96 = vmax.f32 %v91, %v95
    %v97 = vsub.f32 %v91, %v96
    %v98 = vmul.f32 %v97, 1.442695
    %v99 = vpow.pop %v98
    %101 = vset.pattern.permute.xlu0 0
    %102 = vperm.xlu0 %101, %v96
    %v103 = vpop.permute.xlu0 %102
    %v105 = vsub.f32 %v88, %v103
    %v106 = vmul.f32 %v105, 1.442695
    %v107 = vpow.pop %v106
    %v108 = vld [vmem:[#allocation3] sm:$0xff]
    %v109 = vmul.f32 %v99, %v108
    %v110 = vsel %vm92, %v107, 0.0
    %111 = vadd.xlane.f32.xlu0 %v110
    %v112 = vpop.xlane.xlu0 %111
    %v113 = vadd.f32 %v109, %v112
    %vm114 = vcmask 7168
    %115 = vst.msk [vmem:[#allocation3] sm:$0xff] %vm114, %v113
    %v116 = vld [vmem:[#allocation10] sm:$0xff]
    %v117 = vpack.c.bf16 %v107, %v107
    %v118 = vpack.c.bf16 %v116, %v116
    %v120 = vsel %vm92, %v117, 0
    %vm122 = vcmask 1043456
    %v124 = vsel %vm122, %v118, 0
    %126 = vmatpush.bf16.msra.mxu0 0
    %127 = vmatpush.bf16.msra.mxu0 0
    %128 = vmatpush.bf16.msra.mxu0 0
    %129 = vmatpush.bf16.msra.mxu0 0
    %130 = vmatpush.bf16.msra.mxu0 0
    %131 = vmatpush.bf16.msra.mxu0 0
    %132 = vmatpush.bf16.msra.mxu0 0
    %133 = vmatpush.bf16.msra.mxu0 %v124
    %134 = vmatmul.bf16.gmra.mxu0 %v120
    %v135 = vpop.f32.mrf.mxu0
    %v136 = vadd.f32 0.0, %v135
    %v137 = vpop.f32.mrf.mxu0
    %138 = vdwg.mxu0
    %v139 = vld [vmem:[#allocation4] sm:$0xff]
    %141 = vset.pattern.permute.xlu0 0
    %142 = vperm.xlu0 %141, %v99
    %v143 = vpop.permute.xlu0 %142
    %v145 = vmul.f32 %v143, %v139
    %v146 = vadd.f32 %v145, %v136
    %147 = vst.msk [vmem:[#allocation4] sm:$0xff] %vm71, %v146
    %148 = vst.msk [vmem:[#allocation2] sm:$0xff] %vm114, %v96
    // Predicated region
    $region30: #{tpu_custom_call.1} parent=1 // pred_check
      %p149 = pneg %p57
    $region31: #{tpu_custom_call.1} parent=1 // pred_check_branch
      %151 = sbr.rel (%p149) target = $region33
    $region32: #{tpu_custom_call.1} parent=1 // pred_region
      %v152 = vld [vmem:[#allocation3] sm:$0xff]
      %v153 = vrcp.pop %v152
      %v154 = vld [vmem:[#allocation4] sm:$0xff]
      %156 = vset.pattern.permute.xlu0 0
      %157 = vperm.xlu0 %156, %v153
      %v158 = vpop.permute.xlu0 %157
      %v160 = vmul.f32 %v154, %v158
      %161 = vst.msk [vmem:[#allocation11] sm:$0xff] %vm71, %v160
    $region33: #{tpu_custom_call.1} parent=1 // pred_fallthru
      _
    // Predicated region
    $region34: #{tpu_custom_call.1} parent=1 // pred_check
      _
    $region35: #{tpu_custom_call.1} parent=1 // pred_check_branch
      %163 = sbr.rel (0) target = $region37
    $region36: #{tpu_custom_call.1} parent=1 // pred_region
      %165 = vsyncadd [#allocation7], 0
      %s167 = sshll.u32 [#allocation11], 4
      %s168 = int_to_ptr.vmem [resolvable:$true] %s167
      %s169 = sshll.u32 %s3, 4
      %s170 = int_to_ptr.hbm [resolvable:$true] %s169
      %172 = dma.vmem_to_hbm [thread:$0]  %s168, 128, %s170, [#allocation7]
    $region37: #{tpu_custom_call.1} parent=1 // pred_fallthru
      _
    // Predicated region
    $region38: #{tpu_custom_call.1} parent=1 // pred_check
      _
    $region39: #{tpu_custom_call.1} parent=1 // pred_check_branch
      %174 = sbr.rel (0) target = $region41
    $region40: #{tpu_custom_call.1} parent=1 // pred_region
      %176 = dma.done [#allocation7], 128
    $region41: #{tpu_custom_call.1} parent=1 // pred_fallthru
      _
    %177 = vsyncpa [#allocation6], 1
    %178 = vsyncpa [#allocation9], 1
    %179 = vsyncpa [#allocation7], 1

</llo_original>
